<compile_context>
chip_gen: v5e
topology: v5e:2x2
jax: 0.10.0
libtpu: 0.0.40
codegen_flags: <defaults>
</compile_context>

<pallas_src>
import jax
import jax.numpy as jnp
from jax.experimental import pallas as pl
from jax.experimental.pallas import tpu as pltpu

NUM_FTRS = 1024   # densenet121 classifier.in_features
N_CLASSES = 3     # n_classes (e.g. normal / pneumonia / covid)
LANES = 128


def head_kernel(x_ref, w_ref, b_ref, o_ref):
    """Fused AdaptiveAvgPool2d((1,1)) + flatten + Linear for one batch tile.

    x_ref: (TB, HW, C)  backbone features, channel-minor (C on the lane axis)
    w_ref: (C, NPAD)    classifier weight, transposed, pre-scaled by 1/HW,
                        zero-padded to a multiple of 128 lanes
    b_ref: (1, NPAD)    classifier bias, zero-padded
    o_ref: (TB, NPAD)   padded logits
    """
    # Pool over the spatial (sublane) axis; the bf16->f32 cast is fused into
    # the reduction and accumulation is f32 (v5e-safe). The 1/HW scale rides
    # on w_ref, so this plain sum IS the adaptive avg-pool.
    pooled = jnp.sum(x_ref[...], axis=1, dtype=jnp.float32)        # (TB, C)
    # nn.Linear: pooled @ W^T + b (weight already transposed & scaled).
    logits = jnp.dot(pooled, w_ref[...],
                     preferred_element_type=jnp.float32)           # (TB, NPAD)
    o_ref[...] = logits + b_ref[...]


def prepare_classifier_params(weight, bias, hw):
    """One-time prep of the nn.Linear(1024, n_classes) parameters.

    Transposes to (C, n_classes), folds the 1/HW adaptive-avg-pool scale into
    the weight, and zero-pads the class axis to a multiple of 128 lanes so the
    kernel's output store is unmasked lane-dense. Call once at init, not per
    forward. (Weight kept f32 — it is a resident 512 KiB block and keeps the
    f32-accumulated pooled activations on the full-precision MXU path.)
    """
    n_classes, C = weight.shape
    n_pad = pl.cdiv(n_classes, LANES) * LANES
    w_t = jnp.transpose(weight).astype(jnp.float32) / jnp.float32(hw)   # (C, n_classes)
    w_pad = jnp.zeros((C, n_pad), jnp.float32).at[:, :n_classes].set(w_t)
    b_pad = jnp.zeros((1, n_pad), jnp.float32).at[0, :n_classes].set(
        bias.astype(jnp.float32))
    return w_pad, b_pad


def covid_classifier_head(features, w_pad, b_pad, n_classes, *,
                          channels_last=False, batch_tile=32):
    """Adaptive avg-pool + flatten + Linear head.

    features: [B, C, H, W] (PyTorch NCHW, channels_last=False) or
              [B, H, W, C] (TPU-native NHWC, channels_last=True; zero-copy).
    w_pad, b_pad: outputs of prepare_classifier_params (precomputed once).
    """
    if channels_last:
        B, H, W, C = features.shape
        x = features.reshape(B, H * W, C)        # contiguous, metadata only
    else:
        B, C, H, W = features.shape
        # One transpose to channel-minor so the in-kernel pool is a cheap
        # sublane reduce instead of a 38%-utilized cross-lane (XLU) reduce.
        # TODO(synk): a TPU-resident densenet backbone emits NHWC directly,
        # making this transpose (and its HBM round trip) disappear.
        x = jnp.transpose(features, (0, 2, 3, 1)).reshape(B, H * W, C)
    HW = H * W
    NPAD = w_pad.shape[1]

    # Batch tiling. TB=32 block = TB*HW*C*2B ~ 3.3 MiB bf16; x2 pipeline
    # buffers + 0.5 MiB resident weight ~ 7 MiB -> fits v5e's 16 MiB default
    # scoped VMEM (and easily v6e/v7x). Keep TB a multiple of 8 whenever the
    # grid has > 1 step so output stores stay sublane-aligned, and split a
    # large single-tile batch into >= 2 steps so v7x's two TensorCores both
    # get work via the "parallel" grid axis.
    TB = min(batch_tile, B)
    if TB < B:
        TB = max(8, (TB // 8) * 8)
    elif B >= 16:
        TB = max(8, (B // 2) // 8 * 8)
    grid_b = pl.cdiv(B, TB)

    # Pad ragged batches so the last tile never reads/writes out of bounds.
    B_pad = grid_b * TB
    if B_pad != B:
        x = jnp.pad(x, ((0, B_pad - B), (0, 0), (0, 0)))

    out_padded = pl.pallas_call(
        head_kernel,
        out_shape=jax.ShapeDtypeStruct((B_pad, NPAD), jnp.float32),
        grid=(grid_b,),
        in_specs=[
            pl.BlockSpec((TB, HW, C), lambda i: (i, 0, 0)),   # features (batch-tiled)
            pl.BlockSpec((C, NPAD), lambda i: (0, 0)),        # weight (resident)
            pl.BlockSpec((1, NPAD), lambda i: (0, 0)),        # bias (resident)
        ],
        out_specs=pl.BlockSpec((TB, NPAD), lambda i: (i, 0)),
        compiler_params=pltpu.CompilerParams(
            dimension_semantics=("parallel",)),               # v7x: shard batch over 2 TCs
    )(x, w_pad, b_pad)

    return out_padded[:B, :n_classes]


if __name__ == "__main__":
    key = jax.random.PRNGKey(0)
    k_feat, k_w, k_b = jax.random.split(key, 3)

    # Module-consistent shapes: densenet121.features on a 224x224 image yields
    # [B, 1024, 7, 7]; use batch=2.
    B, C, H, W = 2, NUM_FTRS, 7, 7
    feats_f32 = jax.random.normal(k_feat, (B, C, H, W), dtype=jnp.float32)
    # Backbone feature map delivered in bf16 (halves feature HBM bytes for
    # this memory-bound head); accumulation stays f32 inside the kernel.
    feats = feats_f32.astype(jnp.bfloat16)

    # Deterministic nn.Linear(1024, n_classes) init
    # (PyTorch default: U(-1/sqrt(C), 1/sqrt(C))).
    bound = 1.0 / jnp.sqrt(jnp.float32(C))
    weight = jax.random.uniform(k_w, (N_CLASSES, C), jnp.float32, -bound, bound)
    bias = jax.random.uniform(k_b, (N_CLASSES,), jnp.float32, -bound, bound)

    # One-time parameter prep (would live in model init, not the forward pass).
    w_pad, b_pad = prepare_classifier_params(weight, bias, H * W)

    out = covid_classifier_head(feats, w_pad, b_pad, N_CLASSES,
                                channels_last=False)
    out = jax.block_until_ready(out)

    # Pure-JAX reference of the same head (avgpool -> flatten -> linear) on the
    # same bf16 features.
    pooled_ref = jnp.mean(feats.astype(jnp.float32), axis=(2, 3))   # (B, C)
    ref = pooled_ref @ weight.T + bias                              # (B, n_classes)

    assert out.shape == (B, N_CLASSES), out.shape
    assert jnp.allclose(out, ref, atol=1e-3, rtol=1e-3), (out, ref)
    print("KERNEL_OK")
</pallas_src>

<mosaic_0001>
module attributes {stable_mosaic.version = 11 : i64} {
  func.func @head_kernel(%arg0: i32, %arg1: memref<2x49x1024xbf16, #tpu.memory_space<vmem>>, %arg2: memref<1024x128xf32, #tpu.memory_space<vmem>>, %arg3: memref<1x128xf32, #tpu.memory_space<vmem>>, %arg4: memref<2x128xf32, #tpu.memory_space<vmem>>) attributes {dimension_semantics = [#tpu.dimension_semantics<parallel>], iteration_bounds = array<i64: 1>, scalar_prefetch = 0 : i64, scratch_operands = 0 : i64, tpu.core_type = #tpu.core_type<tc>, window_params = [{transform_indices = @transform_0, window_bounds = array<i64: 2, 49, 1024>}, {pipeline_mode = #tpu.pipeline_mode<synchronous>, transform_indices = @transform_1, window_bounds = array<i64: 1024, 128>}, {pipeline_mode = #tpu.pipeline_mode<synchronous>, transform_indices = @transform_2, window_bounds = array<i64: 1, 128>}, {transform_indices = @transform_3, window_bounds = array<i64: 2, 128>}]} {
    %c0 = arith.constant 0 : index
    %c0_0 = arith.constant 0 : index
    %c0_1 = arith.constant 0 : index
    %0 = vector.load %arg1[%c0, %c0_0, %c0_1] : memref<2x49x1024xbf16, #tpu.memory_space<vmem>>, vector<2x49x1024xbf16>
    %1 = arith.extf %0 : vector<2x49x1024xbf16> to vector<2x49x1024xf32>
    %cst = arith.constant dense<0.000000e+00> : vector<2x1024xf32>
    %2 = vector.multi_reduction <add>, %1, %cst [1] : vector<2x49x1024xf32> to vector<2x1024xf32>
    %c0_2 = arith.constant 0 : index
    %c0_3 = arith.constant 0 : index
    %3 = vector.load %arg2[%c0_2, %c0_3] : memref<1024x128xf32, #tpu.memory_space<vmem>>, vector<1024x128xf32>
    %cst_4 = arith.constant dense<0.000000e+00> : vector<2x128xf32>
    %4 = tpu.matmul %2, %3, %cst_4 {dimension_numbers = #tpu.dot_dimension_numbers<[1], [0], [0], [1], [0, 0, 1, 1], [], []>} : vector<2x1024xf32>, vector<1024x128xf32>, vector<2x128xf32> -> vector<2x128xf32>
    %c0_5 = arith.constant 0 : index
    %c0_6 = arith.constant 0 : index
    %5 = vector.load %arg3[%c0_5, %c0_6] : memref<1x128xf32, #tpu.memory_space<vmem>>, vector<1x128xf32>
    %6 = vector.broadcast %5 : vector<1x128xf32> to vector<2x128xf32>
    %7 = arith.addf %4, %6 : vector<2x128xf32>
    %c0_7 = arith.constant 0 : index
    %c0_8 = arith.constant 0 : index
    %8 = vector.load %arg4[%c0_7, %c0_8] : memref<2x128xf32, #tpu.memory_space<vmem>>, vector<2x128xf32>
    tpu.vector_store %arg4[%c0_7, %c0_8], %7 {strides = array<i32>} : memref<2x128xf32, #tpu.memory_space<vmem>>, vector<2x128xf32>,
    return
  }
  func.func @transform_0(%arg0: i32) -> (i32, i32, i32) {
    %c0_i32 = arith.constant 0 : i32
    %c0_i32_0 = arith.constant 0 : i32
    %c0_i32_1 = arith.constant 0 : i32
    return %arg0, %c0_i32, %c0_i32_0 : i32, i32, i32
  }
  func.func @transform_1(%arg0: i32) -> (i32, i32) {
    %c0_i32 = arith.constant 0 : i32
    %c0_i32_0 = arith.constant 0 : i32
    %c0_i32_1 = arith.constant 0 : i32
    return %c0_i32, %c0_i32_0 : i32, i32
  }
  func.func @transform_2(%arg0: i32) -> (i32, i32) {
    %c0_i32 = arith.constant 0 : i32
    %c0_i32_0 = arith.constant 0 : i32
    %c0_i32_1 = arith.constant 0 : i32
    return %c0_i32, %c0_i32_0 : i32, i32
  }
  func.func @transform_3(%arg0: i32) -> (i32, i32) {
    %c0_i32 = arith.constant 0 : i32
    %c0_i32_0 = arith.constant 0 : i32
    return %arg0, %c0_i32 : i32, i32
  }
}

</mosaic_0001>

<llo_original>
// kernel: tpu_custom_call.1
$region0: #{tpu_custom_call.1}
  #allocation0 [shape = 'u32[]', space=smem, size = 0x4, offset = 0x4, fixed_abs, tag = 'smem constant byte address 0x4 - core index']
  #allocation1 [shape = 'u32[72,128]{1,0:T(1,128)}', space=vmem, size = 0x9000, scoped, tag = 'internal scratch']
  %s0 = inlined_call_operand.vmem [shape: bf16[2,49,1024], index: 0, kind: input, shape index: {}]
  %s1 = inlined_call_operand.hbm [shape: f32[1024,128], index: 1, kind: input, shape index: {}]
  %s2 = inlined_call_operand.vmem [shape: f32[1,128], index: 2, kind: input, shape index: {}]
  %s3 = inlined_call_operand.hbm [shape: f32[2,128], index: 3, kind: output, shape index: {}]
  %s4 = sld [smem:[#allocation0]]
  $region26: #{tpu_custom_call.1} parent=0
    _
  %s6 = ssub.s32 1, %s4
  %s7 = scalar_select 0, %s6, %s4
  $region1: #{tpu_custom_call.1} parent=0
    #allocation2 [shape = 'u8[524288]{0}', space=vmem, size = 0x80000, scoped, tag = 'input window, operand 1, single buffered']
    #allocation3 [shape = 's32[1]{0}', space=sflag, size = 0x4, scoped, tag = 'scoped memory for tpu_custom_call.1']
    #allocation4 [shape = 's32[1]{0}', space=sflag, size = 0x4, scoped, tag = 'scoped memory for tpu_custom_call.1']
    #allocation5 [shape = 'u8[1024]{0}', space=vmem, size = 0x400, scoped, tag = 'output window, operand 0, single buffered']
    %8 = vsyncpa [#allocation3], 0
    %9 = vsyncpa [#allocation4], 0
    // Predicated region
    $region2: #{tpu_custom_call.1} parent=1 // pred_check
      _
    $region3: #{tpu_custom_call.1} parent=1 // pred_check_branch
      %11 = sbr.rel (0) target = $region5
    $region4: #{tpu_custom_call.1} parent=1 // pred_region
      _
    $region5: #{tpu_custom_call.1} parent=1 // pred_fallthru
      _
    // Predicated region
    $region6: #{tpu_custom_call.1} parent=1 // pred_check
      _
    $region7: #{tpu_custom_call.1} parent=1 // pred_check_branch
      %13 = sbr.rel (0) target = $region9
    $region8: #{tpu_custom_call.1} parent=1 // pred_region
      %15 = vsyncadd [#allocation3], 0
      %s16 = sshll.u32 %s1, 4
      %s17 = int_to_ptr.hbm [resolvable:$true] %s16
      %s18 = sshll.u32 [#allocation2], 4
      %s19 = int_to_ptr.vmem [resolvable:$true] %s18
      %24 = dma.hbm_to_vmem [thread:$0]  %s17, 16384, %s19, [#allocation3], 128, 128, 8
    $region9: #{tpu_custom_call.1} parent=1 // pred_fallthru
      _
    // Predicated region
    $region10: #{tpu_custom_call.1} parent=1 // pred_check
      _
    $region11: #{tpu_custom_call.1} parent=1 // pred_check_branch
      %26 = sbr.rel (0) target = $region13
    $region12: #{tpu_custom_call.1} parent=1 // pred_region
      _
    $region13: #{tpu_custom_call.1} parent=1 // pred_fallthru
      _
    // Predicated region
    $region14: #{tpu_custom_call.1} parent=1 // pred_check
      _
    $region15: #{tpu_custom_call.1} parent=1 // pred_check_branch
      %28 = sbr.rel (0) target = $region17
    $region16: #{tpu_custom_call.1} parent=1 // pred_region
      %30 = dma.done [#allocation3], 16384
    $region17: #{tpu_custom_call.1} parent=1 // pred_fallthru
      _
    %v31 = vld [vmem:[%s0] sm:$0xff]
    %v32 = vld [vmem:[%s0 + $0x8] sm:$0xff]
    %v33 = vld [vmem:[%s0 + $0x10] sm:$0xff]
    %v34 = vld [vmem:[%s0 + $0x18] sm:$0xff]
    %v35 = vld [vmem:[%s0 + $0x20] sm:$0xff]
    %v36 = vld [vmem:[%s0 + $0x28] sm:$0xff]
    %v37 = vld [vmem:[%s0 + $0x30] sm:$0xff]
    %v38 = vld [vmem:[%s0 + $0x38] sm:$0xff]
    %v39 = vld [vmem:[%s0 + $0x40] sm:$0xff]
    %v40 = vld [vmem:[%s0 + $0x48] sm:$0xff]
    %v41 = vld [vmem:[%s0 + $0x50] sm:$0xff]
    %v42 = vld [vmem:[%s0 + $0x58] sm:$0xff]
    %v43 = vld [vmem:[%s0 + $0x60] sm:$0xff]
    %v44 = vld [vmem:[%s0 + $0x68] sm:$0xff]
    %v45 = vld [vmem:[%s0 + $0x70] sm:$0xff]
    %v46 = vld [vmem:[%s0 + $0x78] sm:$0xff]
    %v47 = vld [vmem:[%s0 + $0x80] sm:$0xff]
    %v48 = vld [vmem:[%s0 + $0x88] sm:$0xff]
    %v49 = vld [vmem:[%s0 + $0x90] sm:$0xff]
    %v50 = vld [vmem:[%s0 + $0x98] sm:$0xff]
    %v51 = vld [vmem:[%s0 + $0xa0] sm:$0xff]
    %v52 = vld [vmem:[%s0 + $0xa8] sm:$0xff]
    %v53 = vld [vmem:[%s0 + $0xb0] sm:$0xff]
    %v54 = vld [vmem:[%s0 + $0xb8] sm:$0xff]
    %v55 = vld [vmem:[%s0 + $0xc0] sm:$0x11]
    %v56 = vld [vmem:[%s0 + $0xc8] sm:$0x11]
    %v57 = vld [vmem:[%s0 + $0xd0] sm:$0x11]
    %v58 = vld [vmem:[%s0 + $0xd8] sm:$0x11]
    %v59 = vld [vmem:[%s0 + $0xe0] sm:$0xff]
    %v60 = vld [vmem:[%s0 + $0xe8] sm:$0xff]
    %v61 = vld [vmem:[%s0 + $0xf0] sm:$0xff]
    %v62 = vld [vmem:[%s0 + $0xf8] sm:$0xff]
    %v63 = vld [vmem:[%s0 + $0x100] sm:$0xff]
    %v64 = vld [vmem:[%s0 + $0x108] sm:$0xff]
    %v65 = vld [vmem:[%s0 + $0x110] sm:$0xff]
    %v66 = vld [vmem:[%s0 + $0x118] sm:$0xff]
    %v67 = vld [vmem:[%s0 + $0x120] sm:$0xff]
    %v68 = vld [vmem:[%s0 + $0x128] sm:$0xff]
    %v69 = vld [vmem:[%s0 + $0x130] sm:$0xff]
    %v70 = vld [vmem:[%s0 + $0x138] sm:$0xff]
    %v71 = vld [vmem:[%s0 + $0x140] sm:$0xff]
    %v72 = vld [vmem:[%s0 + $0x148] sm:$0xff]
    %v73 = vld [vmem:[%s0 + $0x150] sm:$0xff]
    %v74 = vld [vmem:[%s0 + $0x158] sm:$0xff]
    %v75 = vld [vmem:[%s0 + $0x160] sm:$0xff]
    %v76 = vld [vmem:[%s0 + $0x168] sm:$0xff]
    %v77 = vld [vmem:[%s0 + $0x170] sm:$0xff]
    %v78 = vld [vmem:[%s0 + $0x178] sm:$0xff]
    %v79 = vld [vmem:[%s0 + $0x180] sm:$0xff]
    %v80 = vld [vmem:[%s0 + $0x188] sm:$0xff]
    %v81 = vld [vmem:[%s0 + $0x190] sm:$0xff]
    %v82 = vld [vmem:[%s0 + $0x198] sm:$0xff]
    %v83 = vld [vmem:[%s0 + $0x1a0] sm:$0x11]
    %v84 = vld [vmem:[%s0 + $0x1a8] sm:$0x11]
    %v85 = vld [vmem:[%s0 + $0x1b0] sm:$0x11]
    %v86 = vld [vmem:[%s0 + $0x1b8] sm:$0x11]
    %v87 = vunpack.c.l.bf16 %v31
    %v88 = vunpack.c.h.bf16 %v31
    %v89 = vunpack.c.l.bf16 %v32
    %v90 = vunpack.c.h.bf16 %v32
    %v91 = vunpack.c.l.bf16 %v33
    %v92 = vunpack.c.h.bf16 %v33
    %v93 = vunpack.c.l.bf16 %v34
    %v94 = vunpack.c.h.bf16 %v34
    %v95 = vunpack.c.l.bf16 %v35
    %v96 = vunpack.c.h.bf16 %v35
    %v97 = vunpack.c.l.bf16 %v36
    %v98 = vunpack.c.h.bf16 %v36
    %v99 = vunpack.c.l.bf16 %v37
    %v100 = vunpack.c.h.bf16 %v37
    %v101 = vunpack.c.l.bf16 %v38
    %v102 = vunpack.c.h.bf16 %v38
    %v103 = vunpack.c.l.bf16 %v39
    %v104 = vunpack.c.h.bf16 %v39
    %v105 = vunpack.c.l.bf16 %v40
    %v106 = vunpack.c.h.bf16 %v40
    %v107 = vunpack.c.l.bf16 %v41
    %v108 = vunpack.c.h.bf16 %v41
    %v109 = vunpack.c.l.bf16 %v42
    %v110 = vunpack.c.h.bf16 %v42
    %v111 = vunpack.c.l.bf16 %v43
    %v112 = vunpack.c.h.bf16 %v43
    %v113 = vunpack.c.l.bf16 %v44
    %v114 = vunpack.c.h.bf16 %v44
    %v115 = vunpack.c.l.bf16 %v45
    %v116 = vunpack.c.h.bf16 %v45
    %v117 = vunpack.c.l.bf16 %v46
    %v118 = vunpack.c.h.bf16 %v46
    %v119 = vunpack.c.l.bf16 %v47
    %v120 = vunpack.c.h.bf16 %v47
    %v121 = vunpack.c.l.bf16 %v48
    %v122 = vunpack.c.h.bf16 %v48
    %v123 = vunpack.c.l.bf16 %v49
    %v124 = vunpack.c.h.bf16 %v49
    %v125 = vunpack.c.l.bf16 %v50
    %v126 = vunpack.c.h.bf16 %v50
    %v127 = vunpack.c.l.bf16 %v51
    %v128 = vunpack.c.h.bf16 %v51
    %v129 = vunpack.c.l.bf16 %v52
    %v130 = vunpack.c.h.bf16 %v52
    %v131 = vunpack.c.l.bf16 %v53
    %v132 = vunpack.c.h.bf16 %v53
    %v133 = vunpack.c.l.bf16 %v54
    %v134 = vunpack.c.h.bf16 %v54
    %v135 = vunpack.c.l.bf16 %v55
    %v136 = vunpack.c.h.bf16 %v55
    %v137 = vunpack.c.l.bf16 %v56
    %v138 = vunpack.c.h.bf16 %v56
    %v139 = vunpack.c.l.bf16 %v57
    %v140 = vunpack.c.h.bf16 %v57
    %v141 = vunpack.c.l.bf16 %v58
    %v142 = vunpack.c.h.bf16 %v58
    %v143 = vunpack.c.l.bf16 %v59
    %v144 = vunpack.c.h.bf16 %v59
    %v145 = vunpack.c.l.bf16 %v60
    %v146 = vunpack.c.h.bf16 %v60
    %v147 = vunpack.c.l.bf16 %v61
    %v148 = vunpack.c.h.bf16 %v61
    %v149 = vunpack.c.l.bf16 %v62
    %v150 = vunpack.c.h.bf16 %v62
    %v151 = vunpack.c.l.bf16 %v63
    %v152 = vunpack.c.h.bf16 %v63
    %v153 = vunpack.c.l.bf16 %v64
    %v154 = vunpack.c.h.bf16 %v64
    %v155 = vunpack.c.l.bf16 %v65
    %v156 = vunpack.c.h.bf16 %v65
    %v157 = vunpack.c.l.bf16 %v66
    %v158 = vunpack.c.h.bf16 %v66
    %v159 = vunpack.c.l.bf16 %v67
    %v160 = vunpack.c.h.bf16 %v67
    %v161 = vunpack.c.l.bf16 %v68
    %v162 = vunpack.c.h.bf16 %v68
    %v163 = vunpack.c.l.bf16 %v69
    %v164 = vunpack.c.h.bf16 %v69
    %v165 = vunpack.c.l.bf16 %v70
    %v166 = vunpack.c.h.bf16 %v70
    %v167 = vunpack.c.l.bf16 %v71
    %v168 = vunpack.c.h.bf16 %v71
    %v169 = vunpack.c.l.bf16 %v72
    %v170 = vunpack.c.h.bf16 %v72
    %v171 = vunpack.c.l.bf16 %v73
    %v172 = vunpack.c.h.bf16 %v73
    %v173 = vunpack.c.l.bf16 %v74
    %v174 = vunpack.c.h.bf16 %v74
    %v175 = vunpack.c.l.bf16 %v75
    %v176 = vunpack.c.h.bf16 %v75
    %v177 = vunpack.c.l.bf16 %v76
    %v178 = vunpack.c.h.bf16 %v76
    %v179 = vunpack.c.l.bf16 %v77
    %v180 = vunpack.c.h.bf16 %v77
    %v181 = vunpack.c.l.bf16 %v78
    %v182 = vunpack.c.h.bf16 %v78
    %v183 = vunpack.c.l.bf16 %v79
    %v184 = vunpack.c.h.bf16 %v79
    %v185 = vunpack.c.l.bf16 %v80
    %v186 = vunpack.c.h.bf16 %v80
    %v187 = vunpack.c.l.bf16 %v81
    %v188 = vunpack.c.h.bf16 %v81
    %v189 = vunpack.c.l.bf16 %v82
    %v190 = vunpack.c.h.bf16 %v82
    %v191 = vunpack.c.l.bf16 %v83
    %v192 = vunpack.c.h.bf16 %v83
    %v193 = vunpack.c.l.bf16 %v84
    %v194 = vunpack.c.h.bf16 %v84
    %v195 = vunpack.c.l.bf16 %v85
    %v196 = vunpack.c.h.bf16 %v85
    %v197 = vunpack.c.l.bf16 %v86
    %v198 = vunpack.c.h.bf16 %v86
    %v199 = vadd.f32 %v87, %v95
    %v200 = vadd.f32 %v199, %v103
    %v201 = vadd.f32 %v200, %v111
    %v202 = vadd.f32 %v201, %v119
    %v203 = vadd.f32 %v202, %v127
    %vm204 = vcmask 1040384
    %v205 = vsel %vm204, %v135, 0.0
    %v206 = vadd.f32 %v203, %v205
    %v207 = vrot.slane %v206, 4
    %v208 = vadd.f32 %v206, %v207
    %v209 = vrot.slane %v208, 2
    %v210 = vadd.f32 %v208, %v209
    %v211 = vrot.slane %v210, 1
    %v212 = vadd.f32 %v210, %v211
    %v213 = vadd.f32 %v88, %v96
    %v214 = vadd.f32 %v213, %v104
    %v215 = vadd.f32 %v214, %v112
    %v216 = vadd.f32 %v215, %v120
    %v217 = vadd.f32 %v216, %v128
    %v218 = vsel %vm204, %v136, 0.0
    %v219 = vadd.f32 %v217, %v218
    %v220 = vrot.slane %v219, 4
    %v221 = vadd.f32 %v219, %v220
    %v222 = vrot.slane %v221, 2
    %v223 = vadd.f32 %v221, %v222
    %v224 = vrot.slane %v223, 1
    %v225 = vadd.f32 %v223, %v224
    %v226 = vadd.f32 %v89, %v97
    %v227 = vadd.f32 %v226, %v105
    %v228 = vadd.f32 %v227, %v113
    %v229 = vadd.f32 %v228, %v121
    %v230 = vadd.f32 %v229, %v129
    %v231 = vsel %vm204, %v137, 0.0
    %v232 = vadd.f32 %v230, %v231
    %v233 = vrot.slane %v232, 4
    %v234 = vadd.f32 %v232, %v233
    %v235 = vrot.slane %v234, 2
    %v236 = vadd.f32 %v234, %v235
    %v237 = vrot.slane %v236, 1
    %v238 = vadd.f32 %v236, %v237
    %v239 = vadd.f32 %v90, %v98
    %v240 = vadd.f32 %v239, %v106
    %v241 = vadd.f32 %v240, %v114
    %v242 = vadd.f32 %v241, %v122
    %v243 = vadd.f32 %v242, %v130
    %v244 = vsel %vm204, %v138, 0.0
    %v245 = vadd.f32 %v243, %v244
    %v246 = vrot.slane %v245, 4
    %v247 = vadd.f32 %v245, %v246
    %v248 = vrot.slane %v247, 2
    %v249 = vadd.f32 %v247, %v248
    %v250 = vrot.slane %v249, 1
    %v251 = vadd.f32 %v249, %v250
    %v252 = vadd.f32 %v91, %v99
    %v253 = vadd.f32 %v252, %v107
    %v254 = vadd.f32 %v253, %v115
    %v255 = vadd.f32 %v254, %v123
    %v256 = vadd.f32 %v255, %v131
    %v257 = vsel %vm204, %v139, 0.0
    %v258 = vadd.f32 %v256, %v257
    %v259 = vrot.slane %v258, 4
    %v260 = vadd.f32 %v258, %v259
    %v261 = vrot.slane %v260, 2
    %v262 = vadd.f32 %v260, %v261
    %v263 = vrot.slane %v262, 1
    %v264 = vadd.f32 %v262, %v263
    %v265 = vadd.f32 %v92, %v100
    %v266 = vadd.f32 %v265, %v108
    %v267 = vadd.f32 %v266, %v116
    %v268 = vadd.f32 %v267, %v124
    %v269 = vadd.f32 %v268, %v132
    %v270 = vsel %vm204, %v140, 0.0
    %v271 = vadd.f32 %v269, %v270
    %v272 = vrot.slane %v271, 4
    %v273 = vadd.f32 %v271, %v272
    %v274 = vrot.slane %v273, 2
    %v275 = vadd.f32 %v273, %v274
    %v276 = vrot.slane %v275, 1
    %v277 = vadd.f32 %v275, %v276
    %v278 = vadd.f32 %v93, %v101
    %v279 = vadd.f32 %v278, %v109
    %v280 = vadd.f32 %v279, %v117
    %v281 = vadd.f32 %v280, %v125
    %v282 = vadd.f32 %v281, %v133
    %v283 = vsel %vm204, %v141, 0.0
    %v284 = vadd.f32 %v282, %v283
    %v285 = vrot.slane %v284, 4
    %v286 = vadd.f32 %v284, %v285
    %v287 = vrot.slane %v286, 2
    %v288 = vadd.f32 %v286, %v287
    %v289 = vrot.slane %v288, 1
    %v290 = vadd.f32 %v288, %v289
    %v291 = vadd.f32 %v94, %v102
    %v292 = vadd.f32 %v291, %v110
    %v293 = vadd.f32 %v292, %v118
    %v294 = vadd.f32 %v293, %v126
    %v295 = vadd.f32 %v294, %v134
    %v296 = vsel %vm204, %v142, 0.0
    %v297 = vadd.f32 %v295, %v296
    %v298 = vrot.slane %v297, 4
    %v299 = vadd.f32 %v297, %v298
    %v300 = vrot.slane %v299, 2
    %v301 = vadd.f32 %v299, %v300
    %v302 = vrot.slane %v301, 1
    %v303 = vadd.f32 %v301, %v302
    %v304 = vadd.f32 %v143, %v151
    %v305 = vadd.f32 %v304, %v159
    %v306 = vadd.f32 %v305, %v167
    %v307 = vadd.f32 %v306, %v175
    %v308 = vadd.f32 %v307, %v183
    %v309 = vsel %vm204, %v191, 0.0
    %v310 = vadd.f32 %v308, %v309
    %v311 = vrot.slane %v310, 4
    %v312 = vadd.f32 %v310, %v311
    %v313 = vrot.slane %v312, 2
    %v314 = vadd.f32 %v312, %v313
    %v315 = vrot.slane %v314, 1
    %v316 = vadd.f32 %v314, %v315
    %v317 = vadd.f32 %v144, %v152
    %v318 = vadd.f32 %v317, %v160
    %v319 = vadd.f32 %v318, %v168
    %v320 = vadd.f32 %v319, %v176
    %v321 = vadd.f32 %v320, %v184
    %v322 = vsel %vm204, %v192, 0.0
    %v323 = vadd.f32 %v321, %v322
    %v324 = vrot.slane %v323, 4
    %v325 = vadd.f32 %v323, %v324
    %v326 = vrot.slane %v325, 2
    %v327 = vadd.f32 %v325, %v326
    %v328 = vrot.slane %v327, 1
    %v329 = vadd.f32 %v327, %v328
    %v330 = vadd.f32 %v145, %v153
    %v331 = vadd.f32 %v330, %v161
    %v332 = vadd.f32 %v331, %v169
    %v333 = vadd.f32 %v332, %v177
    %v334 = vadd.f32 %v333, %v185
    %v335 = vsel %vm204, %v193, 0.0
    %v336 = vadd.f32 %v334, %v335
    %v337 = vrot.slane %v336, 4
    %v338 = vadd.f32 %v336, %v337
    %v339 = vrot.slane %v338, 2
    %v340 = vadd.f32 %v338, %v339
    %v341 = vrot.slane %v340, 1
    %v342 = vadd.f32 %v340, %v341
    %v343 = vadd.f32 %v146, %v154
    %v344 = vadd.f32 %v343, %v162
    %v345 = vadd.f32 %v344, %v170
    %v346 = vadd.f32 %v345, %v178
    %v347 = vadd.f32 %v346, %v186
    %v348 = vsel %vm204, %v194, 0.0
    %v349 = vadd.f32 %v347, %v348
    %v350 = vrot.slane %v349, 4
    %v351 = vadd.f32 %v349, %v350
    %v352 = vrot.slane %v351, 2
    %v353 = vadd.f32 %v351, %v352
    %v354 = vrot.slane %v353, 1
    %v355 = vadd.f32 %v353, %v354
    %v356 = vadd.f32 %v147, %v155
    %v357 = vadd.f32 %v356, %v163
    %v358 = vadd.f32 %v357, %v171
    %v359 = vadd.f32 %v358, %v179
    %v360 = vadd.f32 %v359, %v187
    %v361 = vsel %vm204, %v195, 0.0
    %v362 = vadd.f32 %v360, %v361
    %v363 = vrot.slane %v362, 4
    %v364 = vadd.f32 %v362, %v363
    %v365 = vrot.slane %v364, 2
    %v366 = vadd.f32 %v364, %v365
    %v367 = vrot.slane %v366, 1
    %v368 = vadd.f32 %v366, %v367
    %v369 = vadd.f32 %v148, %v156
    %v370 = vadd.f32 %v369, %v164
    %v371 = vadd.f32 %v370, %v172
    %v372 = vadd.f32 %v371, %v180
    %v373 = vadd.f32 %v372, %v188
    %v374 = vsel %vm204, %v196, 0.0
    %v375 = vadd.f32 %v373, %v374
    %v376 = vrot.slane %v375, 4
    %v377 = vadd.f32 %v375, %v376
    %v378 = vrot.slane %v377, 2
    %v379 = vadd.f32 %v377, %v378
    %v380 = vrot.slane %v379, 1
    %v381 = vadd.f32 %v379, %v380
    %v382 = vadd.f32 %v149, %v157
    %v383 = vadd.f32 %v382, %v165
    %v384 = vadd.f32 %v383, %v173
    %v385 = vadd.f32 %v384, %v181
    %v386 = vadd.f32 %v385, %v189
    %v387 = vsel %vm204, %v197, 0.0
    %v388 = vadd.f32 %v386, %v387
    %v389 = vrot.slane %v388, 4
    %v390 = vadd.f32 %v388, %v389
    %v391 = vrot.slane %v390, 2
    %v392 = vadd.f32 %v390, %v391
    %v393 = vrot.slane %v392, 1
    %v394 = vadd.f32 %v392, %v393
    %v395 = vadd.f32 %v150, %v158
    %v396 = vadd.f32 %v395, %v166
    %v397 = vadd.f32 %v396, %v174
    %v398 = vadd.f32 %v397, %v182
    %v399 = vadd.f32 %v398, %v190
    %v400 = vsel %vm204, %v198, 0.0
    %v401 = vadd.f32 %v399, %v400
    %v402 = vrot.slane %v401, 4
    %v403 = vadd.f32 %v401, %v402
    %v404 = vrot.slane %v403, 2
    %v405 = vadd.f32 %v403, %v404
    %v406 = vrot.slane %v405, 1
    %v407 = vadd.f32 %v405, %v406
    %v408 = vld [vmem:[#allocation2] sm:$0xff]
    %v409 = vld [vmem:[#allocation2 + $0x8] sm:$0xff]
    %v410 = vld [vmem:[#allocation2 + $0x10] sm:$0xff]
    %v411 = vld [vmem:[#allocation2 + $0x18] sm:$0xff]
    %v412 = vld [vmem:[#allocation2 + $0x20] sm:$0xff]
    %v413 = vld [vmem:[#allocation2 + $0x28] sm:$0xff]
    %v414 = vld [vmem:[#allocation2 + $0x30] sm:$0xff]
    %v415 = vld [vmem:[#allocation2 + $0x38] sm:$0xff]
    %v416 = vld [vmem:[#allocation2 + $0x40] sm:$0xff]
    %v417 = vld [vmem:[#allocation2 + $0x48] sm:$0xff]
    %v418 = vld [vmem:[#allocation2 + $0x50] sm:$0xff]
    %v419 = vld [vmem:[#allocation2 + $0x58] sm:$0xff]
    %v420 = vld [vmem:[#allocation2 + $0x60] sm:$0xff]
    %v421 = vld [vmem:[#allocation2 + $0x68] sm:$0xff]
    %v422 = vld [vmem:[#allocation2 + $0x70] sm:$0xff]
    %v423 = vld [vmem:[#allocation2 + $0x78] sm:$0xff]
    %v424 = vld [vmem:[#allocation2 + $0x80] sm:$0xff]
    %v425 = vld [vmem:[#allocation2 + $0x88] sm:$0xff]
    %v426 = vld [vmem:[#allocation2 + $0x90] sm:$0xff]
    %v427 = vld [vmem:[#allocation2 + $0x98] sm:$0xff]
    %v428 = vld [vmem:[#allocation2 + $0xa0] sm:$0xff]
    %v429 = vld [vmem:[#allocation2 + $0xa8] sm:$0xff]
    %v430 = vld [vmem:[#allocation2 + $0xb0] sm:$0xff]
    %v431 = vld [vmem:[#allocation2 + $0xb8] sm:$0xff]
    %v432 = vld [vmem:[#allocation2 + $0xc0] sm:$0xff]
    %v433 = vld [vmem:[#allocation2 + $0xc8] sm:$0xff]
    %v434 = vld [vmem:[#allocation2 + $0xd0] sm:$0xff]
    %v435 = vld [vmem:[#allocation2 + $0xd8] sm:$0xff]
    %v436 = vld [vmem:[#allocation2 + $0xe0] sm:$0xff]
    %v437 = vld [vmem:[#allocation2 + $0xe8] sm:$0xff]
    %v438 = vld [vmem:[#allocation2 + $0xf0] sm:$0xff]
    %v439 = vld [vmem:[#allocation2 + $0xf8] sm:$0xff]
    %v440 = vld [vmem:[#allocation2 + $0x100] sm:$0xff]
    %v441 = vld [vmem:[#allocation2 + $0x108] sm:$0xff]
    %v442 = vld [vmem:[#allocation2 + $0x110] sm:$0xff]
    %v443 = vld [vmem:[#allocation2 + $0x118] sm:$0xff]
    %v444 = vld [vmem:[#allocation2 + $0x120] sm:$0xff]
    %v445 = vld [vmem:[#allocation2 + $0x128] sm:$0xff]
    %v446 = vld [vmem:[#allocation2 + $0x130] sm:$0xff]
    %v447 = vld [vmem:[#allocation2 + $0x138] sm:$0xff]
    %v448 = vld [vmem:[#allocation2 + $0x140] sm:$0xff]
    %v449 = vld [vmem:[#allocation2 + $0x148] sm:$0xff]
    %v450 = vld [vmem:[#allocation2 + $0x150] sm:$0xff]
    %v451 = vld [vmem:[#allocation2 + $0x158] sm:$0xff]
    %v452 = vld [vmem:[#allocation2 + $0x160] sm:$0xff]
    %v453 = vld [vmem:[#allocation2 + $0x168] sm:$0xff]
    %v454 = vld [vmem:[#allocation2 + $0x170] sm:$0xff]
    %v455 = vld [vmem:[#allocation2 + $0x178] sm:$0xff]
    %v456 = vld [vmem:[#allocation2 + $0x180] sm:$0xff]
    %v457 = vld [vmem:[#allocation2 + $0x188] sm:$0xff]
    %v458 = vld [vmem:[#allocation2 + $0x190] sm:$0xff]
    %v459 = vld [vmem:[#allocation2 + $0x198] sm:$0xff]
    %v460 = vld [vmem:[#allocation2 + $0x1a0] sm:$0xff]
    %v461 = vld [vmem:[#allocation2 + $0x1a8] sm:$0xff]
    %v462 = vld [vmem:[#allocation2 + $0x1b0] sm:$0xff]
    %v463 = vld [vmem:[#allocation2 + $0x1b8] sm:$0xff]
    %v464 = vld [vmem:[#allocation2 + $0x1c0] sm:$0xff]
    %v465 = vld [vmem:[#allocation2 + $0x1c8] sm:$0xff]
    %v466 = vld [vmem:[#allocation2 + $0x1d0] sm:$0xff]
    %v467 = vld [vmem:[#allocation2 + $0x1d8] sm:$0xff]
    %v468 = vld [vmem:[#allocation2 + $0x1e0] sm:$0xff]
    %v469 = vld [vmem:[#allocation2 + $0x1e8] sm:$0xff]
    %v470 = vld [vmem:[#allocation2 + $0x1f0] sm:$0xff]
    %v471 = vld [vmem:[#allocation2 + $0x1f8] sm:$0xff]
    %v472 = vld [vmem:[#allocation2 + $0x200] sm:$0xff]
    %v473 = vld [vmem:[#allocation2 + $0x208] sm:$0xff]
    %v474 = vld [vmem:[#allocation2 + $0x210] sm:$0xff]
    %v475 = vld [vmem:[#allocation2 + $0x218] sm:$0xff]
    %v476 = vld [vmem:[#allocation2 + $0x220] sm:$0xff]
    %v477 = vld [vmem:[#allocation2 + $0x228] sm:$0xff]
    %v478 = vld [vmem:[#allocation2 + $0x230] sm:$0xff]
    %v479 = vld [vmem:[#allocation2 + $0x238] sm:$0xff]
    %v480 = vld [vmem:[#allocation2 + $0x240] sm:$0xff]
    %v481 = vld [vmem:[#allocation2 + $0x248] sm:$0xff]
    %v482 = vld [vmem:[#allocation2 + $0x250] sm:$0xff]
    %v483 = vld [vmem:[#allocation2 + $0x258] sm:$0xff]
    %v484 = vld [vmem:[#allocation2 + $0x260] sm:$0xff]
    %v485 = vld [vmem:[#allocation2 + $0x268] sm:$0xff]
    %v486 = vld [vmem:[#allocation2 + $0x270] sm:$0xff]
    %v487 = vld [vmem:[#allocation2 + $0x278] sm:$0xff]
    %v488 = vld [vmem:[#allocation2 + $0x280] sm:$0xff]
    %v489 = vld [vmem:[#allocation2 + $0x288] sm:$0xff]
    %v490 = vld [vmem:[#allocation2 + $0x290] sm:$0xff]
    %v491 = vld [vmem:[#allocation2 + $0x298] sm:$0xff]
    %v492 = vld [vmem:[#allocation2 + $0x2a0] sm:$0xff]
    %v493 = vld [vmem:[#allocation2 + $0x2a8] sm:$0xff]
    %v494 = vld [vmem:[#allocation2 + $0x2b0] sm:$0xff]
    %v495 = vld [vmem:[#allocation2 + $0x2b8] sm:$0xff]
    %v496 = vld [vmem:[#allocation2 + $0x2c0] sm:$0xff]
    %v497 = vld [vmem:[#allocation2 + $0x2c8] sm:$0xff]
    %v498 = vld [vmem:[#allocation2 + $0x2d0] sm:$0xff]
    %v499 = vld [vmem:[#allocation2 + $0x2d8] sm:$0xff]
    %v500 = vld [vmem:[#allocation2 + $0x2e0] sm:$0xff]
    %v501 = vld [vmem:[#allocation2 + $0x2e8] sm:$0xff]
    %v502 = vld [vmem:[#allocation2 + $0x2f0] sm:$0xff]
    %v503 = vld [vmem:[#allocation2 + $0x2f8] sm:$0xff]
    %v504 = vld [vmem:[#allocation2 + $0x300] sm:$0xff]
    %v505 = vld [vmem:[#allocation2 + $0x308] sm:$0xff]
    %v506 = vld [vmem:[#allocation2 + $0x310] sm:$0xff]
    %v507 = vld [vmem:[#allocation2 + $0x318] sm:$0xff]
    %v508 = vld [vmem:[#allocation2 + $0x320] sm:$0xff]
    %v509 = vld [vmem:[#allocation2 + $0x328] sm:$0xff]
    %v510 = vld [vmem:[#allocation2 + $0x330] sm:$0xff]
    %v511 = vld [vmem:[#allocation2 + $0x338] sm:$0xff]
    %v512 = vld [vmem:[#allocation2 + $0x340] sm:$0xff]
    %v513 = vld [vmem:[#allocation2 + $0x348] sm:$0xff]
    %v514 = vld [vmem:[#allocation2 + $0x350] sm:$0xff]
    %v515 = vld [vmem:[#allocation2 + $0x358] sm:$0xff]
    %v516 = vld [vmem:[#allocation2 + $0x360] sm:$0xff]
    %v517 = vld [vmem:[#allocation2 + $0x368] sm:$0xff]
    %v518 = vld [vmem:[#allocation2 + $0x370] sm:$0xff]
    %v519 = vld [vmem:[#allocation2 + $0x378] sm:$0xff]
    %v520 = vld [vmem:[#allocation2 + $0x380] sm:$0xff]
    %v521 = vld [vmem:[#allocation2 + $0x388] sm:$0xff]
    %v522 = vld [vmem:[#allocation2 + $0x390] sm:$0xff]
    %v523 = vld [vmem:[#allocation2 + $0x398] sm:$0xff]
    %v524 = vld [vmem:[#allocation2 + $0x3a0] sm:$0xff]
    %v525 = vld [vmem:[#allocation2 + $0x3a8] sm:$0xff]
    %v526 = vld [vmem:[#allocation2 + $0x3b0] sm:$0xff]
    %v527 = vld [vmem:[#allocation2 + $0x3b8] sm:$0xff]
    %v528 = vld [vmem:[#allocation2 + $0x3c0] sm:$0xff]
    %v529 = vld [vmem:[#allocation2 + $0x3c8] sm:$0xff]
    %v530 = vld [vmem:[#allocation2 + $0x3d0] sm:$0xff]
    %v531 = vld [vmem:[#allocation2 + $0x3d8] sm:$0xff]
    %v532 = vld [vmem:[#allocation2 + $0x3e0] sm:$0xff]
    %v533 = vld [vmem:[#allocation2 + $0x3e8] sm:$0xff]
    %v534 = vld [vmem:[#allocation2 + $0x3f0] sm:$0xff]
    %v535 = vld [vmem:[#allocation2 + $0x3f8] sm:$0xff]
    %v536 = vld [vmem:[%s2] sm:$0x1]
    %v538 = vperm.slane %v536, 0
    %vm556 = vcmask 1041409
    %v557 = vsel %vm556, %v316, %v212
    %v558 = vsel %vm556, %v329, %v225
    %v559 = vsel %vm556, %v342, %v238
    %v560 = vsel %vm556, %v355, %v251
    %v561 = vsel %vm556, %v368, %v264
    %v562 = vsel %vm556, %v381, %v277
    %v563 = vsel %vm556, %v394, %v290
    %v564 = vsel %vm556, %v407, %v303
    %573 = vmatpush.msra.mxu0 %v423
    %574 = vmatpush.msra.mxu0 %v422
    %575 = vmatpush.msra.mxu0 %v421
    %576 = vmatpush.msra.mxu0 %v420
    %577 = vmatpush.msra.mxu0 %v419
    %578 = vmatpush.msra.mxu0 %v418
    %579 = vmatpush.msra.mxu0 %v417
    %580 = vmatpush.msra.mxu0 %v416
    %581 = vmatpush.msra.mxu0 %v415
    %582 = vmatpush.msra.mxu0 %v414
    %583 = vmatpush.msra.mxu0 %v413
    %584 = vmatpush.msra.mxu0 %v412
    %585 = vmatpush.msra.mxu0 %v411
    %586 = vmatpush.msra.mxu0 %v410
    %587 = vmatpush.msra.mxu0 %v409
    %588 = vmatpush.msra.mxu0 %v408
    %589 = vmatmul.f32.gmra.mxu0 %v557
    %v590 = vpop.f32.mrf.mxu0
    %v591 = vadd.f32 %v538, %v590
    %592 = vdwg.mxu0
    %593 = vmatpush.msra.mxu0 %v439
    %594 = vmatpush.msra.mxu0 %v438
    %595 = vmatpush.msra.mxu0 %v437
    %596 = vmatpush.msra.mxu0 %v436
    %597 = vmatpush.msra.mxu0 %v435
    %598 = vmatpush.msra.mxu0 %v434
    %599 = vmatpush.msra.mxu0 %v433
    %600 = vmatpush.msra.mxu0 %v432
    %601 = vmatpush.msra.mxu0 %v431
    %602 = vmatpush.msra.mxu0 %v430
    %603 = vmatpush.msra.mxu0 %v429
    %604 = vmatpush.msra.mxu0 %v428
    %605 = vmatpush.msra.mxu0 %v427
    %606 = vmatpush.msra.mxu0 %v426
    %607 = vmatpush.msra.mxu0 %v425
    %608 = vmatpush.msra.mxu0 %v424
    %609 = vmatmul.f32.gmra.mxu0 %v558
    %v610 = vpop.f32.mrf.mxu0
    %v611 = vadd.f32 %v591, %v610
    %612 = vdwg.mxu0
    %613 = vmatpush.msra.mxu0 %v455
    %614 = vmatpush.msra.mxu0 %v454
    %615 = vmatpush.msra.mxu0 %v453
    %616 = vmatpush.msra.mxu0 %v452
    %617 = vmatpush.msra.mxu0 %v451
    %618 = vmatpush.msra.mxu0 %v450
    %619 = vmatpush.msra.mxu0 %v449
    %620 = vmatpush.msra.mxu0 %v448
    %621 = vmatpush.msra.mxu0 %v447
    %622 = vmatpush.msra.mxu0 %v446
    %623 = vmatpush.msra.mxu0 %v445
    %624 = vmatpush.msra.mxu0 %v444
    %625 = vmatpush.msra.mxu0 %v443
    %626 = vmatpush.msra.mxu0 %v442
    %627 = vmatpush.msra.mxu0 %v441
    %628 = vmatpush.msra.mxu0 %v440
    %629 = vmatmul.f32.gmra.mxu0 %v559
    %v630 = vpop.f32.mrf.mxu0
    %v631 = vadd.f32 %v611, %v630
    %632 = vdwg.mxu0
    %633 = vmatpush.msra.mxu0 %v471
    %634 = vmatpush.msra.mxu0 %v470
    %635 = vmatpush.msra.mxu0 %v469
    %636 = vmatpush.msra.mxu0 %v468
    %637 = vmatpush.msra.mxu0 %v467
    %638 = vmatpush.msra.mxu0 %v466
    %639 = vmatpush.msra.mxu0 %v465
    %640 = vmatpush.msra.mxu0 %v464
    %641 = vmatpush.msra.mxu0 %v463
    %642 = vmatpush.msra.mxu0 %v462
    %643 = vmatpush.msra.mxu0 %v461
    %644 = vmatpush.msra.mxu0 %v460
    %645 = vmatpush.msra.mxu0 %v459
    %646 = vmatpush.msra.mxu0 %v458
    %647 = vmatpush.msra.mxu0 %v457
    %648 = vmatpush.msra.mxu0 %v456
    %649 = vmatmul.f32.gmra.mxu0 %v560
    %v650 = vpop.f32.mrf.mxu0
    %v651 = vadd.f32 %v631, %v650
    %652 = vdwg.mxu0
    %653 = vmatpush.msra.mxu0 %v487
    %654 = vmatpush.msra.mxu0 %v486
    %655 = vmatpush.msra.mxu0 %v485
    %656 = vmatpush.msra.mxu0 %v484
    %657 = vmatpush.msra.mxu0 %v483
    %658 = vmatpush.msra.mxu0 %v482
    %659 = vmatpush.msra.mxu0 %v481
    %660 = vmatpush.msra.mxu0 %v480
    %661 = vmatpush.msra.mxu0 %v479
    %662 = vmatpush.msra.mxu0 %v478
    %663 = vmatpush.msra.mxu0 %v477
    %664 = vmatpush.msra.mxu0 %v476
    %665 = vmatpush.msra.mxu0 %v475
    %666 = vmatpush.msra.mxu0 %v474
    %667 = vmatpush.msra.mxu0 %v473
    %668 = vmatpush.msra.mxu0 %v472
    %669 = vmatmul.f32.gmra.mxu0 %v561
    %v670 = vpop.f32.mrf.mxu0
    %v671 = vadd.f32 %v651, %v670
    %672 = vdwg.mxu0
    %673 = vmatpush.msra.mxu0 %v503
    %674 = vmatpush.msra.mxu0 %v502
    %675 = vmatpush.msra.mxu0 %v501
    %676 = vmatpush.msra.mxu0 %v500
    %677 = vmatpush.msra.mxu0 %v499
    %678 = vmatpush.msra.mxu0 %v498
    %679 = vmatpush.msra.mxu0 %v497
    %680 = vmatpush.msra.mxu0 %v496
    %681 = vmatpush.msra.mxu0 %v495
    %682 = vmatpush.msra.mxu0 %v494
    %683 = vmatpush.msra.mxu0 %v493
    %684 = vmatpush.msra.mxu0 %v492
    %685 = vmatpush.msra.mxu0 %v491
    %686 = vmatpush.msra.mxu0 %v490
    %687 = vmatpush.msra.mxu0 %v489
    %688 = vmatpush.msra.mxu0 %v488
    %689 = vmatmul.f32.gmra.mxu0 %v562
    %v690 = vpop.f32.mrf.mxu0
    %v691 = vadd.f32 %v671, %v690
    %692 = vdwg.mxu0
    %693 = vmatpush.msra.mxu0 %v519
    %694 = vmatpush.msra.mxu0 %v518
    %695 = vmatpush.msra.mxu0 %v517
    %696 = vmatpush.msra.mxu0 %v516
    %697 = vmatpush.msra.mxu0 %v515
    %698 = vmatpush.msra.mxu0 %v514
    %699 = vmatpush.msra.mxu0 %v513
    %700 = vmatpush.msra.mxu0 %v512
    %701 = vmatpush.msra.mxu0 %v511
    %702 = vmatpush.msra.mxu0 %v510
    %703 = vmatpush.msra.mxu0 %v509
    %704 = vmatpush.msra.mxu0 %v508
    %705 = vmatpush.msra.mxu0 %v507
    %706 = vmatpush.msra.mxu0 %v506
    %707 = vmatpush.msra.mxu0 %v505
    %708 = vmatpush.msra.mxu0 %v504
    %709 = vmatmul.f32.gmra.mxu0 %v563
    %v710 = vpop.f32.mrf.mxu0
    %v711 = vadd.f32 %v691, %v710
    %712 = vdwg.mxu0
    %713 = vmatpush.msra.mxu0 %v535
    %714 = vmatpush.msra.mxu0 %v534
    %715 = vmatpush.msra.mxu0 %v533
    %716 = vmatpush.msra.mxu0 %v532
    %717 = vmatpush.msra.mxu0 %v531
    %718 = vmatpush.msra.mxu0 %v530
    %719 = vmatpush.msra.mxu0 %v529
    %720 = vmatpush.msra.mxu0 %v528
    %721 = vmatpush.msra.mxu0 %v527
    %722 = vmatpush.msra.mxu0 %v526
    %723 = vmatpush.msra.mxu0 %v525
    %724 = vmatpush.msra.mxu0 %v524
    %725 = vmatpush.msra.mxu0 %v523
    %726 = vmatpush.msra.mxu0 %v522
    %727 = vmatpush.msra.mxu0 %v521
    %728 = vmatpush.msra.mxu0 %v520
    %729 = vmatmul.f32.gmra.mxu0 %v564
    %v730 = vpop.f32.mrf.mxu0
    %v731 = vadd.f32 %v711, %v730
    %732 = vdwg.mxu0
    %733 = vst [vmem:[#allocation5] sm:$0x3] %v731
    // Predicated region
    $region18: #{tpu_custom_call.1} parent=1 // pred_check
      _
    $region19: #{tpu_custom_call.1} parent=1 // pred_check_branch
      %735 = sbr.rel (0) target = $region21
    $region20: #{tpu_custom_call.1} parent=1 // pred_region
      %737 = vsyncadd [#allocation4], 0
      %s739 = sshll.u32 [#allocation5], 4
      %s740 = int_to_ptr.vmem [resolvable:$true] %s739
      %s741 = sshll.u32 %s3, 4
      %s742 = int_to_ptr.hbm [resolvable:$true] %s741
      %744 = dma.vmem_to_hbm [thread:$0]  %s740, 32, %s742, [#allocation4]
    $region21: #{tpu_custom_call.1} parent=1 // pred_fallthru
      _
    // Predicated region
    $region22: #{tpu_custom_call.1} parent=1 // pred_check
      _
    $region23: #{tpu_custom_call.1} parent=1 // pred_check_branch
      %746 = sbr.rel (0) target = $region25
    $region24: #{tpu_custom_call.1} parent=1 // pred_region
      %748 = dma.done [#allocation4], 32
    $region25: #{tpu_custom_call.1} parent=1 // pred_fallthru
      _
    %749 = vsyncpa [#allocation3], 1
    %750 = vsyncpa [#allocation4], 1

</llo_original>
